<compile_context>
chip_gen: v6e
topology: v6e:2x2x1
jax: 0.10.0
libtpu: 0.0.40
codegen_flags: <defaults>
</compile_context>

<pallas_src>
import functools

import jax
import jax.numpy as jnp
from jax import lax
from jax.experimental import pallas as pl
from jax.experimental.pallas import tpu as pltpu


def _vmem_capacity_bytes():
    """Generation-aware physical VMEM size; falls back to the smallest (v7x)."""
    try:
        cap = getattr(pltpu.get_tpu_info(), "vmem_capacity_bytes", None)
        if cap:
            return int(cap)
    except Exception:
        pass
    return 64 * 1024 * 1024


def _sublane_pack(dtype):
    """Minimum sublane tile for dtype: 8 (f32), 16 (bf16), 32 (int8/fp8)."""
    return max(8, 32 // jnp.dtype(dtype).itemsize)


def _round_down(v, m):
    return (v // m) * m


def _pick_row_tile(rows, pack, budget_bytes, bytes_per_row, min_blocks=4):
    """Rows per block: budget-limited, >= min_blocks grid steps when possible
    (v7x megacore balance + pipelining), multiple of the dtype sublane pack,
    preferring an exact divisor of `rows` (no ragged last block) when one
    exists within 2x of the budgeted size."""
    if rows <= pack:
        return rows                      # full-extent row dim is always legal
    tr = max(pack, _round_down(budget_bytes // max(bytes_per_row, 1), pack))
    tr = min(tr, _round_down(rows, pack))
    if rows // min_blocks >= pack:
        tr = min(tr, _round_down(rows // min_blocks, pack))
    d = tr
    while d >= max(pack, tr // 2):
        if rows % d == 0:
            return d
        d -= pack
    return tr                            # ragged last block (masked by Pallas)


# --------------------------------------------------------------------------
# Fused path: one (TR, HW) block per grid step (reduction over full H*W).
# --------------------------------------------------------------------------
def _ln2d_fused_kernel(x_ref, w_ref, b_ref, o_ref, *, eps, inv_n):
    # x_ref: (TR, HW); w_ref / b_ref: (TR, 1); o_ref: (TR, HW)
    x = x_ref[...].astype(jnp.float32)
    # One-pass stats: no full-width centered temp is stored; the only
    # full-width work is two reductions and the final fused multiply-add.
    s1 = jnp.sum(x, axis=-1, keepdims=True)
    s2 = jnp.sum(x * x, axis=-1, keepdims=True)
    mean = s1 * inv_n
    var = jnp.maximum(s2 * inv_n - mean * mean, 0.0)   # unbiased=False
    inv = lax.rsqrt(var + eps)                         # EUP
    scale = inv * w_ref[...]                           # fold channel weight
    shift = b_ref[...] - mean * scale                  # fold mean + bias
    o_ref[...] = (x * scale + shift).astype(o_ref.dtype)


# --------------------------------------------------------------------------
# Chunked path (very large H*W): pass 1 accumulates per-row sum / sum-of-
# squares over lane-dense H*W chunks; a tiny JAX finalize builds per-row
# scale/shift; pass 2 applies them.
# --------------------------------------------------------------------------
def _ln2d_stats_kernel(x_ref, s1_ref, s2_ref, *, hw, thw, needs_mask):
    k = pl.program_id(1)

    @pl.when(k == 0)
    def _init():
        s1_ref[...] = jnp.zeros_like(s1_ref)
        s2_ref[...] = jnp.zeros_like(s2_ref)

    x = x_ref[...].astype(jnp.float32)
    if needs_mask:
        # Last H*W chunk is ragged: zero out-of-range lanes before reducing.
        col = lax.broadcasted_iota(jnp.int32, x.shape, 1)
        x = jnp.where(col < (hw - k * thw), x, 0.0)
    s1_ref[...] += jnp.sum(x, axis=-1, keepdims=True)
    s2_ref[...] += jnp.sum(x * x, axis=-1, keepdims=True)


def _ln2d_apply_kernel(x_ref, scale_ref, shift_ref, o_ref):
    o_ref[...] = (x_ref[...].astype(jnp.float32) * scale_ref[...]
                  + shift_ref[...]).astype(o_ref.dtype)


# --------------------------------------------------------------------------
# Wrapper
# --------------------------------------------------------------------------
def layernorm2d(x, weight, bias, eps=1e-5, *, hw_chunk=None):
    """x: (N, C, H, W); weight, bias: (C,). Matches the PyTorch LayerNorm2d
    (mean/var over H,W with unbiased=False, then per-channel affine).
    `hw_chunk` forces the chunked path with the given H*W chunk (testing)."""
    N, C, H, W = x.shape
    R = N * C
    HW = H * W
    itemsize = jnp.dtype(x.dtype).itemsize
    pack = _sublane_pack(x.dtype)

    vmem_cap = _vmem_capacity_bytes()
    vmem_limit = min(vmem_cap // 2, 64 * 1024 * 1024)
    tile_budget = min(8 * 1024 * 1024, vmem_cap // 4)

    # Rows are (n, c) pairs; the H*W reduction runs over the lane-dense last
    # axis.  x is never padded or sliced (no extra HBM copies).
    x2 = x.reshape(R, HW)
    w_row = jnp.tile(weight.astype(jnp.float32), N).reshape(R, 1)
    b_row = jnp.tile(bias.astype(jnp.float32), N).reshape(R, 1)

    # Per-row, per-step footprint for a fused (tr, HW) block: double-buffered
    # input + output blocks plus ~2 full-width f32 temporaries (upcast of x
    # and the output expression) -> correct budgeting for bf16/int8 inputs.
    fused_bytes_per_row = 4 * HW * itemsize + 8 * HW
    fused_max_footprint = min(vmem_cap // 3, 24 * 1024 * 1024)
    use_fused = (hw_chunk is None) and (pack * fused_bytes_per_row <= fused_max_footprint)

    if use_fused:
        tr = _pick_row_tile(R, pack, tile_budget, fused_bytes_per_row)
        out2 = pl.pallas_call(
            functools.partial(_ln2d_fused_kernel, eps=eps, inv_n=1.0 / HW),
            out_shape=jax.ShapeDtypeStruct((R, HW), x.dtype),
            grid_spec=pltpu.PrefetchScalarGridSpec(
                num_scalar_prefetch=0,
                grid=(pl.cdiv(R, tr),),
                in_specs=[
                    pl.BlockSpec((tr, HW), lambda i: (i, 0)),
                    # Per-step (tr, 1) param blocks: kept blocked (not a single
                    # resident (R,1) buffer) because a 1-wide VMEM array is
                    # lane-padded to 128 and would waste ~512*R bytes of VMEM.
                    pl.BlockSpec((tr, 1), lambda i: (i, 0)),
                    pl.BlockSpec((tr, 1), lambda i: (i, 0)),
                ],
                out_specs=pl.BlockSpec((tr, HW), lambda i: (i, 0)),
            ),
            compiler_params=pltpu.CompilerParams(
                dimension_semantics=("parallel",),
                vmem_limit_bytes=vmem_limit,
            ),
        )(x2, w_row, b_row)
        return out2.reshape(N, C, H, W)

    # ---- Chunked path (huge H*W, or forced for testing) -------------------
    thw = 32 * 1024 if hw_chunk is None else int(hw_chunk)
    if thw >= HW:
        thw = HW                                   # full extent: always legal
    else:
        thw = max(128, _round_down(thw, 128))      # lane-dense 128-multiple
        if thw >= HW:
            thw = HW

    chunk_bytes_per_row = 4 * thw * itemsize + 8 * thw
    tr = _pick_row_tile(R, pack, tile_budget, chunk_bytes_per_row)
    n_r = pl.cdiv(R, tr)
    n_k = pl.cdiv(HW, thw)
    needs_mask = (HW % thw) != 0

    s1, s2 = pl.pallas_call(
        functools.partial(_ln2d_stats_kernel, hw=HW, thw=thw, needs_mask=needs_mask),
        out_shape=(jax.ShapeDtypeStruct((R, 1), jnp.float32),
                   jax.ShapeDtypeStruct((R, 1), jnp.float32)),
        grid_spec=pltpu.PrefetchScalarGridSpec(
            num_scalar_prefetch=0,
            grid=(n_r, n_k),
            in_specs=[pl.BlockSpec((tr, thw), lambda i, k: (i, k))],
            out_specs=[pl.BlockSpec((tr, 1), lambda i, k: (i, 0)),
                       pl.BlockSpec((tr, 1), lambda i, k: (i, 0))],
        ),
        compiler_params=pltpu.CompilerParams(
            dimension_semantics=("parallel", "arbitrary"),
            vmem_limit_bytes=vmem_limit,
        ),
    )(x2)

    # Tiny (R,1) finalize in plain JAX: fold mean/var/weight/bias into a
    # per-row scale & shift so the second pass is a single fused multiply-add.
    mean = s1 * (1.0 / HW)
    var = jnp.maximum(s2 * (1.0 / HW) - mean * mean, 0.0)
    inv = lax.rsqrt(var + eps)
    scale = inv * w_row
    shift = b_row - mean * scale

    out2 = pl.pallas_call(
        _ln2d_apply_kernel,
        out_shape=jax.ShapeDtypeStruct((R, HW), x.dtype),
        grid_spec=pltpu.PrefetchScalarGridSpec(
            num_scalar_prefetch=0,
            grid=(n_r, n_k),
            in_specs=[
                pl.BlockSpec((tr, thw), lambda i, k: (i, k)),
                pl.BlockSpec((tr, 1), lambda i, k: (i, 0)),
                pl.BlockSpec((tr, 1), lambda i, k: (i, 0)),
            ],
            out_specs=pl.BlockSpec((tr, thw), lambda i, k: (i, k)),
        ),
        compiler_params=pltpu.CompilerParams(
            dimension_semantics=("parallel", "parallel"),
            vmem_limit_bytes=vmem_limit,
        ),
    )(x2, scale, shift)
    return out2.reshape(N, C, H, W)


def layernorm2d_ref(x, weight, bias, eps=1e-5):
    mean = jnp.mean(x, axis=(2, 3), keepdims=True)
    var = jnp.mean((x - mean) ** 2, axis=(2, 3), keepdims=True)
    xn = (x - mean) / jnp.sqrt(var + eps)
    return xn * weight.reshape(1, -1, 1, 1) + bias.reshape(1, -1, 1, 1)


if __name__ == "__main__":
    key = jax.random.PRNGKey(0)
    kx, kw, kb, kx2 = jax.random.split(key, 4)

    # Case 1: nominal small shape -> fused single-kernel path.
    N, C, H, W = 2, 4, 16, 16
    x = jax.random.normal(kx, (N, C, H, W), dtype=jnp.float32)
    weight = jax.random.normal(kw, (C,), dtype=jnp.float32)
    bias = jax.random.normal(kb, (C,), dtype=jnp.float32)

    out = jax.block_until_ready(layernorm2d(x, weight, bias, eps=1e-5))
    ref = layernorm2d_ref(x, weight, bias, eps=1e-5)
    assert out.shape == (N, C, H, W)
    assert jnp.max(jnp.abs(out - ref)) < 1e-4

    # Case 2: force the chunked (large-H*W) path at a small shape to validate
    # the stats-accumulate + apply kernels, including ragged rows (R = 10) and
    # a ragged last H*W chunk (18*18 = 324 = 2*128 + 68).
    N2, C2, H2, W2 = 2, 5, 18, 18
    x_b = jax.random.normal(kx2, (N2, C2, H2, W2), dtype=jnp.float32)
    w_b = jax.random.normal(kw, (C2,), dtype=jnp.float32)
    b_b = jax.random.normal(kb, (C2,), dtype=jnp.float32)

    out_b = jax.block_until_ready(
        layernorm2d(x_b, w_b, b_b, eps=1e-5, hw_chunk=128))
    ref_b = layernorm2d_ref(x_b, w_b, b_b, eps=1e-5)
    assert out_b.shape == (N2, C2, H2, W2)
    assert jnp.max(jnp.abs(out_b - ref_b)) < 1e-4

    print("KERNEL_OK")
</pallas_src>

<mosaic_0001>
module attributes {stable_mosaic.version = 11 : i64} {
  func.func @_ln2d_fused_kernel(%arg0: i32, %arg1: memref<8x256xf32, #tpu.memory_space<vmem>>, %arg2: memref<8x1xf32, #tpu.memory_space<vmem>>, %arg3: memref<8x1xf32, #tpu.memory_space<vmem>>, %arg4: memref<8x256xf32, #tpu.memory_space<vmem>>) attributes {dimension_semantics = [#tpu.dimension_semantics<parallel>], iteration_bounds = array<i64: 1>, scalar_prefetch = 0 : i64, scratch_operands = 0 : i64, tpu.core_type = #tpu.core_type<tc>, window_params = [{transform_indices = @transform_0, window_bounds = array<i64: 8, 256>}, {transform_indices = @transform_1, window_bounds = array<i64: 8, 1>}, {transform_indices = @transform_2, window_bounds = array<i64: 8, 1>}, {transform_indices = @transform_3, window_bounds = array<i64: 8, 256>}]} {
    %c0 = arith.constant 0 : index
    %c0_0 = arith.constant 0 : index
    %0 = vector.load %arg1[%c0, %c0_0] : memref<8x256xf32, #tpu.memory_space<vmem>>, vector<8x256xf32>
    %cst = arith.constant dense<0.000000e+00> : vector<8xf32>
    %1 = vector.multi_reduction <add>, %0, %cst [1] : vector<8x256xf32> to vector<8xf32>
    %2 = vector.shape_cast %1 : vector<8xf32> to vector<8x1xf32>
    %3 = arith.mulf %0, %0 : vector<8x256xf32>
    %cst_1 = arith.constant dense<0.000000e+00> : vector<8xf32>
    %4 = vector.multi_reduction <add>, %3, %cst_1 [1] : vector<8x256xf32> to vector<8xf32>
    %5 = vector.shape_cast %4 : vector<8xf32> to vector<8x1xf32>
    %cst_2 = arith.constant 3.906250e-03 : f32
    %6 = vector.broadcast %cst_2 : f32 to vector<8x1xf32>
    %7 = arith.mulf %2, %6 : vector<8x1xf32>
    %cst_3 = arith.constant 3.906250e-03 : f32
    %8 = vector.broadcast %cst_3 : f32 to vector<8x1xf32>
    %9 = arith.mulf %5, %8 : vector<8x1xf32>
    %10 = arith.mulf %7, %7 : vector<8x1xf32>
    %11 = arith.subf %9, %10 : vector<8x1xf32>
    %cst_4 = arith.constant 0.000000e+00 : f32
    %12 = vector.broadcast %cst_4 : f32 to vector<8x1xf32>
    %13 = arith.maximumf %11, %12 : vector<8x1xf32>
    %cst_5 = arith.constant 9.99999974E-6 : f32
    %14 = vector.broadcast %cst_5 : f32 to vector<8x1xf32>
    %15 = arith.addf %13, %14 : vector<8x1xf32>
    %16 = math.rsqrt %15 : vector<8x1xf32>
    %c0_6 = arith.constant 0 : index
    %c0_7 = arith.constant 0 : index
    %17 = vector.load %arg2[%c0_6, %c0_7] : memref<8x1xf32, #tpu.memory_space<vmem>>, vector<8x1xf32>
    %18 = arith.mulf %16, %17 : vector<8x1xf32>
    %c0_8 = arith.constant 0 : index
    %c0_9 = arith.constant 0 : index
    %19 = vector.load %arg3[%c0_8, %c0_9] : memref<8x1xf32, #tpu.memory_space<vmem>>, vector<8x1xf32>
    %20 = arith.mulf %7, %18 : vector<8x1xf32>
    %21 = arith.subf %19, %20 : vector<8x1xf32>
    %22 = vector.broadcast %18 : vector<8x1xf32> to vector<8x256xf32>
    %23 = arith.mulf %0, %22 : vector<8x256xf32>
    %24 = vector.broadcast %21 : vector<8x1xf32> to vector<8x256xf32>
    %25 = arith.addf %23, %24 : vector<8x256xf32>
    %c0_10 = arith.constant 0 : index
    %c0_11 = arith.constant 0 : index
    %26 = vector.load %arg4[%c0_10, %c0_11] : memref<8x256xf32, #tpu.memory_space<vmem>>, vector<8x256xf32>
    tpu.vector_store %arg4[%c0_10, %c0_11], %25 {strides = array<i32>} : memref<8x256xf32, #tpu.memory_space<vmem>>, vector<8x256xf32>,
    return
  }
  func.func @transform_0(%arg0: i32) -> (i32, i32) {
    %c0_i32 = arith.constant 0 : i32
    %c0_i32_0 = arith.constant 0 : i32
    return %arg0, %c0_i32 : i32, i32
  }
  func.func @transform_1(%arg0: i32) -> (i32, i32) {
    %c0_i32 = arith.constant 0 : i32
    %c0_i32_0 = arith.constant 0 : i32
    return %arg0, %c0_i32 : i32, i32
  }
  func.func @transform_2(%arg0: i32) -> (i32, i32) {
    %c0_i32 = arith.constant 0 : i32
    %c0_i32_0 = arith.constant 0 : i32
    return %arg0, %c0_i32 : i32, i32
  }
  func.func @transform_3(%arg0: i32) -> (i32, i32) {
    %c0_i32 = arith.constant 0 : i32
    %c0_i32_0 = arith.constant 0 : i32
    return %arg0, %c0_i32 : i32, i32
  }
}

</mosaic_0001>

<llo_original>
// kernel: tpu_custom_call.1
$region0: #{tpu_custom_call.1}
  #allocation0 [shape = 'u32[]', space=smem, size = 0x4, offset = 0x4, fixed_abs, tag = 'smem constant byte address 0x4 - core index']
  #allocation1 [shape = 'u32[144,128]{1,0:T(1,128)}', space=vmem, size = 0x12000, scoped, tag = 'internal scratch']
  %s0 = inlined_call_operand.vmem [shape: f32[8,256], index: 0, kind: input, shape index: {}]
  %s1 = inlined_call_operand.vmem [shape: f32[8,1], index: 1, kind: input, shape index: {}]
  %s2 = inlined_call_operand.vmem [shape: f32[8,1], index: 2, kind: input, shape index: {}]
  %s3 = inlined_call_operand.hbm [shape: f32[8,256], index: 3, kind: output, shape index: {}]
  %s4 = sld [smem:[#allocation0]]
  $region22: #{tpu_custom_call.1} parent=0
    _
  %s6 = ssub.s32 1, %s4
  %s7 = scalar_select 0, %s6, %s4
  $region1: #{tpu_custom_call.1} parent=0
    #allocation2 [shape = 'u8[8192]{0}', space=vmem, size = 0x2000, scoped, tag = 'output window, operand 0, single buffered']
    #allocation3 [shape = 's32[1]{0}', space=sflag, size = 0x4, scoped, tag = 'scoped memory for tpu_custom_call.1']
    %8 = vsyncpa [#allocation3], 0
    // Predicated region
    $region2: #{tpu_custom_call.1} parent=1 // pred_check
      _
    $region3: #{tpu_custom_call.1} parent=1 // pred_check_branch
      %10 = sbr.rel (0) target = $region5
    $region4: #{tpu_custom_call.1} parent=1 // pred_region
      _
    $region5: #{tpu_custom_call.1} parent=1 // pred_fallthru
      _
    // Predicated region
    $region6: #{tpu_custom_call.1} parent=1 // pred_check
      _
    $region7: #{tpu_custom_call.1} parent=1 // pred_check_branch
      %12 = sbr.rel (0) target = $region9
    $region8: #{tpu_custom_call.1} parent=1 // pred_region
      _
    $region9: #{tpu_custom_call.1} parent=1 // pred_fallthru
      _
    // Predicated region
    $region10: #{tpu_custom_call.1} parent=1 // pred_check
      _
    $region11: #{tpu_custom_call.1} parent=1 // pred_check_branch
      %14 = sbr.rel (0) target = $region13
    $region12: #{tpu_custom_call.1} parent=1 // pred_region
      _
    $region13: #{tpu_custom_call.1} parent=1 // pred_fallthru
      _
    %v15 = vld [vmem:[%s0] sm:$0xff]
    %v16 = vld [vmem:[%s0 + $0x8] sm:$0xff]
    %v17 = vadd.f32 %v15, %v16
    %18 = vadd.xlane.f32.xlu0 %v17
    %v19 = vpop.xlane.xlu0 %18
    %v20 = vmul.f32 %v15, %v15
    %v21 = vmul.f32 %v16, %v16
    %v22 = vadd.f32 %v20, %v21
    %23 = vadd.xlane.f32.xlu0 %v22
    %v24 = vpop.xlane.xlu0 %23
    %v25 = vmul.f32 %v19, 0.00390625
    %v26 = vmul.f32 %v24, 0.00390625
    %v27 = vmul.f32 %v25, %v25
    %v28 = vsub.f32 %v26, %v27
    %v29 = vmax.f32 %v28, 0.0
    %v30 = vadd.f32 %v29, 1e-05
    %v31 = vrsqrt.pop %v30
    %v32 = vld [vmem:[%s1] sm:$0xff]
    %v33 = vmul.f32 %v31, %v32
    %v34 = vld [vmem:[%s2] sm:$0xff]
    %v35 = vmul.f32 %v25, %v33
    %v36 = vsub.f32 %v34, %v35
    %38 = vset.pattern.permute.xlu0 0
    %39 = vperm.xlu0 %38, %v33
    %v40 = vpop.permute.xlu0 %39
    %v42 = vmul.f32 %v15, %v40
    %v43 = vmul.f32 %v16, %v40
    %45 = vset.pattern.permute.xlu0 0
    %46 = vperm.xlu0 %45, %v36
    %v47 = vpop.permute.xlu0 %46
    %v49 = vadd.f32 %v42, %v47
    %v50 = vadd.f32 %v43, %v47
    %51 = vst [vmem:[#allocation2] sm:$0xff] %v49
    %52 = vst [vmem:[#allocation2 + $0x8] sm:$0xff] %v50
    // Predicated region
    $region14: #{tpu_custom_call.1} parent=1 // pred_check
      _
    $region15: #{tpu_custom_call.1} parent=1 // pred_check_branch
      %54 = sbr.rel (0) target = $region17
    $region16: #{tpu_custom_call.1} parent=1 // pred_region
      %s56 = ssub.s32 256, 256
      %57 = vsyncadd [#allocation3], %s56
      %s59 = sshll.u32 [#allocation2], 4
      %s60 = int_to_ptr.vmem [resolvable:$true] %s59
      %62 = dma.vmem_to_hbm [thread:$0]  %s60, 256, %s3, [#allocation3]
    $region17: #{tpu_custom_call.1} parent=1 // pred_fallthru
      _
    // Predicated region
    $region18: #{tpu_custom_call.1} parent=1 // pred_check
      _
    $region19: #{tpu_custom_call.1} parent=1 // pred_check_branch
      %64 = sbr.rel (0) target = $region21
    $region20: #{tpu_custom_call.1} parent=1 // pred_region
      %65 = dma.done [#allocation3], 256
    $region21: #{tpu_custom_call.1} parent=1 // pred_fallthru
      _
    %66 = vsyncpa [#allocation3], 1

</llo_original>
